<compile_context>
chip_gen: v7x
topology: tpu7x:2x2x1
jax: 0.10.0
libtpu: 0.0.40
codegen_flags: <defaults>
</compile_context>

<pallas_src>
import jax
import jax.numpy as jnp
from jax.experimental import pallas as pl
from jax.experimental.pallas import tpu as pltpu

PAD = 128          # padded hidden width; requires hidden_dim <= 128, input_dim <= 128
N_LOGITS = 4


# ----------------------------- Pallas kernel ------------------------------ #
def _gnn_policy_kernel(x_ref, edge_ref, w_ref, b_ref, out_ref):
    """One graph per grid step.

    x_ref    : (1, N, F)     f32    node features
    edge_ref : (1, 2, E)     int32  [src_row; dst_row]
    w_ref    : (PAD, 3*PAD)  f32    [W1 | W2 | Whead], zero padded
    b_ref    : (1, 3*PAD)    f32    [b1 | b2 | bhead], zero padded
    out_ref  : (1, 1, PAD)   f32    [logits(4) | value(1) | 0 ...]
    """
    _, n, f = x_ref.shape
    n_edges = edge_ref.shape[-1]
    pad = out_ref.shape[-1]

    x = x_ref[0]                                     # (N, F)
    edges = edge_ref[0]                              # (2, E) int32

    # ---- normalized adjacency, built in-kernel -----------------------------
    # A[i, j] = #edges with dst == i and src == j (duplicate edges accumulate,
    # matching an un-coalesced scatter-add), then A_hat = A + I.
    node_ids = jax.lax.broadcasted_iota(jnp.int32, (n, n_edges), 0)
    onehot_src = (node_ids == edges[0:1, :]).astype(jnp.float32)   # (N, E)
    onehot_dst = (node_ids == edges[1:2, :]).astype(jnp.float32)   # (N, E)
    a = jax.lax.dot_general(onehot_dst, onehot_src,
                            (((1,), (1,)), ((), ())),
                            preferred_element_type=jnp.float32)    # (N, N)
    row = jax.lax.broadcasted_iota(jnp.int32, (n, n), 0)
    col = jax.lax.broadcasted_iota(jnp.int32, (n, n), 1)
    a_hat = a + (row == col).astype(jnp.float32)                   # + I

    deg = jnp.sum(a_hat, axis=1, keepdims=True)                    # (N, 1), >= 1
    dinv = jax.lax.rsqrt(deg)                                      # D^-1/2 diag
    # D^-1/2 (A+I) D^-1/2 X W  ==  dinv * ((A+I) @ (dinv * (X @ W)))
    # (factored form: avoids materializing the row-broadcast / any transpose)

    # ---- packed parameters (static, 128-aligned ref slices) ----------------
    w1 = w_ref[0:f, 0:pad]            # (F, PAD)
    w2 = w_ref[:, pad:2 * pad]        # (PAD, PAD)
    wh = w_ref[:, 2 * pad:3 * pad]    # (PAD, PAD)  = [Wp | Wv | 0]
    b1 = b_ref[:, 0:pad]
    b2 = b_ref[:, pad:2 * pad]
    bh = b_ref[:, 2 * pad:3 * pad]

    # ---- GCN layer 1 --------------------------------------------------------
    xw = jnp.dot(x, w1, preferred_element_type=jnp.float32)        # (N, PAD)
    h1 = jnp.dot(a_hat, dinv * xw, preferred_element_type=jnp.float32)
    h1 = jnp.maximum(dinv * h1 + b1, 0.0)

    # ---- GCN layer 2 --------------------------------------------------------
    hw = jnp.dot(h1, w2, preferred_element_type=jnp.float32)
    h2 = jnp.dot(a_hat, dinv * hw, preferred_element_type=jnp.float32)
    h2 = jnp.maximum(dinv * h2 + b2, 0.0)

    # ---- agent selection + fused policy/value heads -------------------------
    # TODO(synk): PyTorch `nonzero` returns a dynamic number of rows; we assume
    # exactly one agent node (multiple agents would sum, zero agents gives 0).
    # The >0.5 test is a robust form of the reference's `x[:, 1] == 1.0` flag.
    mask = (x[:, 1:2] > 0.5).astype(jnp.float32)                   # (N, 1)
    agent = jnp.sum(mask * h2, axis=0, keepdims=True)              # (1, PAD)

    out_ref[0] = (jnp.dot(agent, wh, preferred_element_type=jnp.float32) + bh)


# ------------------------------- Wrappers ---------------------------------- #
@jax.jit
def _policy_call(x, edge_index, w_slab, b_slab):
    """Batched hot path.  x: (B, N, F) f32, edge_index: (B, 2, E) int32."""
    bsz, n, f = x.shape
    n_edges = edge_index.shape[-1]
    out = pl.pallas_call(
        _gnn_policy_kernel,
        out_shape=jax.ShapeDtypeStruct((bsz, 1, PAD), jnp.float32),
        grid=(bsz,),
        in_specs=[
            pl.BlockSpec((1, n, f), lambda i: (i, 0, 0)),
            pl.BlockSpec((1, 2, n_edges), lambda i: (i, 0, 0)),
            pl.BlockSpec((PAD, 3 * PAD), lambda i: (0, 0)),   # shared weights
            pl.BlockSpec((1, 3 * PAD), lambda i: (0, 0)),     # shared biases
        ],
        out_specs=pl.BlockSpec((1, 1, PAD), lambda i: (i, 0, 0)),
        compiler_params=pltpu.CompilerParams(
            dimension_semantics=("parallel",)),   # megacore-split on v7x
    )(x, edge_index, w_slab, b_slab)
    return out[:, 0, :N_LOGITS], out[:, 0, N_LOGITS:N_LOGITS + 1]


def gnn_solver_policy(x, edge_index, w_slab, b_slab):
    """Single graph, reference semantics: returns (logits (4,), value (1,))."""
    logits, value = _policy_call(x[None], edge_index[None], w_slab, b_slab)
    return logits[0], value[0]


# ---------------------- Param init + one-time packing ----------------------- #
def init_params(key, input_dim=6, hidden_dim=64):
    ks = jax.random.split(key, 4)

    def glorot(k, shape):
        lim = (6.0 / (shape[0] + shape[1])) ** 0.5
        return jax.random.uniform(k, shape, jnp.float32, -lim, lim)

    return {
        "w1": glorot(ks[0], (input_dim, hidden_dim)),
        "b1": jnp.zeros((hidden_dim,), jnp.float32),
        "w2": glorot(ks[1], (hidden_dim, hidden_dim)),
        "b2": jnp.zeros((hidden_dim,), jnp.float32),
        "wp": glorot(ks[2], (hidden_dim, N_LOGITS)),
        "bp": jnp.zeros((N_LOGITS,), jnp.float32),
        "wv": glorot(ks[3], (hidden_dim, 1)),
        "bv": jnp.zeros((1,), jnp.float32),
    }


def pack_params(params):
    """One-time packing (NOT in the per-call hot path)."""
    input_dim, hidden_dim = params["w1"].shape
    assert input_dim <= PAD and hidden_dim <= PAD
    w = jnp.zeros((PAD, 3 * PAD), jnp.float32)
    w = w.at[:input_dim, :hidden_dim].set(params["w1"])
    w = w.at[:hidden_dim, PAD:PAD + hidden_dim].set(params["w2"])
    w = w.at[:hidden_dim, 2 * PAD:2 * PAD + N_LOGITS].set(params["wp"])
    w = w.at[:hidden_dim, 2 * PAD + N_LOGITS:2 * PAD + N_LOGITS + 1].set(params["wv"])
    b = jnp.zeros((1, 3 * PAD), jnp.float32)
    b = b.at[0, :hidden_dim].set(params["b1"])
    b = b.at[0, PAD:PAD + hidden_dim].set(params["b2"])
    b = b.at[0, 2 * PAD:2 * PAD + N_LOGITS].set(params["bp"])
    b = b.at[0, 2 * PAD + N_LOGITS:2 * PAD + N_LOGITS + 1].set(params["bv"])
    return w, b


# --------------------------------- Main ------------------------------------ #
if __name__ == "__main__":
    key = jax.random.PRNGKey(0)
    k_param, k_x = jax.random.split(key)

    N, INPUT_DIM, HIDDEN_DIM = 8, 6, 64
    params = init_params(k_param, INPUT_DIM, HIDDEN_DIM)
    w_slab, b_slab = pack_params(params)          # packed once, reused per call

    # Node features; column 1 is the "is agent" flag — exactly one node set.
    x = jax.random.normal(k_x, (N, INPUT_DIM), jnp.float32)
    x = x.at[:, 1].set(0.0).at[3, 1].set(1.0)

    # Undirected ring graph as (src, dst) pairs in both directions.
    src = jnp.arange(N, dtype=jnp.int32)
    dst = (src + 1) % N
    edge_index = jnp.stack(
        [jnp.concatenate([src, dst]), jnp.concatenate([dst, src])], axis=0)

    # Single-graph call (reference module semantics).
    logits, value = gnn_solver_policy(x, edge_index, w_slab, b_slab)
    jax.block_until_ready((logits, value))
    assert logits.shape == (N_LOGITS,) and value.shape == (1,)

    # Batched call: grid=(B,) amortizes launch/DMA cost and lets v7x megacore
    # split the batch across its two TensorCores.
    xb = jnp.stack([x, x])
    eb = jnp.stack([edge_index, edge_index])
    lb, vb = _policy_call(xb, eb, w_slab, b_slab)
    jax.block_until_ready((lb, vb))
    assert lb.shape == (2, N_LOGITS) and vb.shape == (2, 1)

    print("KERNEL_OK")
</pallas_src>

<mosaic_0001>
module attributes {stable_mosaic.version = 11 : i64} {
  func.func @_gnn_policy_kernel(%arg0: i32, %arg1: memref<1x8x6xf32, #tpu.memory_space<vmem>>, %arg2: memref<1x2x16xi32, #tpu.memory_space<vmem>>, %arg3: memref<128x384xf32, #tpu.memory_space<vmem>>, %arg4: memref<1x384xf32, #tpu.memory_space<vmem>>, %arg5: memref<1x1x128xf32, #tpu.memory_space<vmem>>) attributes {dimension_semantics = [#tpu.dimension_semantics<parallel>], iteration_bounds = array<i64: 1>, scalar_prefetch = 0 : i64, scratch_operands = 0 : i64, tpu.core_type = #tpu.core_type<tc>, window_params = [{transform_indices = @transform_0, window_bounds = array<i64: 1, 8, 6>}, {transform_indices = @transform_1, window_bounds = array<i64: 1, 2, 16>}, {pipeline_mode = #tpu.pipeline_mode<synchronous>, transform_indices = @transform_2, window_bounds = array<i64: 128, 384>}, {pipeline_mode = #tpu.pipeline_mode<synchronous>, transform_indices = @transform_3, window_bounds = array<i64: 1, 384>}, {transform_indices = @transform_4, window_bounds = array<i64: 1, 1, 128>}]} {
    %c0 = arith.constant 0 : index
    %c0_0 = arith.constant 0 : index
    %c0_1 = arith.constant 0 : index
    %0 = vector.load %arg1[%c0, %c0_0, %c0_1] : memref<1x8x6xf32, #tpu.memory_space<vmem>>, vector<1x8x6xf32>
    %1 = vector.shape_cast %0 : vector<1x8x6xf32> to vector<8x6xf32>
    %c0_2 = arith.constant 0 : index
    %c0_3 = arith.constant 0 : index
    %c0_4 = arith.constant 0 : index
    %2 = vector.load %arg2[%c0_2, %c0_3, %c0_4] : memref<1x2x16xi32, #tpu.memory_space<vmem>>, vector<1x2x16xi32>
    %3 = vector.shape_cast %2 : vector<1x2x16xi32> to vector<2x16xi32>
    %4 = tpu.iota {dimensions = array<i32: 0>} : vector<8x16xi32>
    %5 = vector.extract_strided_slice %3 {offsets = [0, 0], sizes = [1, 16], strides = [1, 1]} : vector<2x16xi32> to vector<1x16xi32>
    %6 = vector.broadcast %5 : vector<1x16xi32> to vector<8x16xi32>
    %7 = arith.cmpi eq, %4, %6 : vector<8x16xi32>
    %8 = arith.extui %7 : vector<8x16xi1> to vector<8x16xi32>
    %9 = arith.sitofp %8 : vector<8x16xi32> to vector<8x16xf32>
    %10 = vector.extract_strided_slice %3 {offsets = [1, 0], sizes = [1, 16], strides = [1, 1]} : vector<2x16xi32> to vector<1x16xi32>
    %11 = vector.broadcast %10 : vector<1x16xi32> to vector<8x16xi32>
    %12 = arith.cmpi eq, %4, %11 : vector<8x16xi32>
    %13 = arith.extui %12 : vector<8x16xi1> to vector<8x16xi32>
    %14 = arith.sitofp %13 : vector<8x16xi32> to vector<8x16xf32>
    %cst = arith.constant dense<0.000000e+00> : vector<8x8xf32>
    %15 = tpu.matmul %14, %9, %cst {dimension_numbers = #tpu.dot_dimension_numbers<[1], [1], [0], [0], [0, 0, 1, 0], [], []>} : vector<8x16xf32>, vector<8x16xf32>, vector<8x8xf32> -> vector<8x8xf32>
    %16 = tpu.iota {dimensions = array<i32: 0>} : vector<8x8xi32>
    %17 = tpu.iota {dimensions = array<i32: 1>} : vector<8x8xi32>
    %18 = arith.cmpi eq, %16, %17 : vector<8x8xi32>
    %19 = arith.extui %18 : vector<8x8xi1> to vector<8x8xi32>
    %20 = arith.sitofp %19 : vector<8x8xi32> to vector<8x8xf32>
    %21 = arith.addf %15, %20 : vector<8x8xf32>
    %cst_5 = arith.constant dense<0.000000e+00> : vector<8xf32>
    %22 = vector.multi_reduction <add>, %21, %cst_5 [1] : vector<8x8xf32> to vector<8xf32>
    %23 = vector.shape_cast %22 : vector<8xf32> to vector<8x1xf32>
    %24 = math.rsqrt %23 : vector<8x1xf32>
    %c0_6 = arith.constant 0 : index
    %c0_7 = arith.constant 0 : index
    %25 = vector.load %arg3[%c0_6, %c0_7] : memref<128x384xf32, #tpu.memory_space<vmem>>, vector<6x128xf32>
    %c0_8 = arith.constant 0 : index
    %c128 = arith.constant 128 : index
    %26 = vector.load %arg3[%c0_8, %c128] : memref<128x384xf32, #tpu.memory_space<vmem>>, vector<128x128xf32>
    %c0_9 = arith.constant 0 : index
    %c256 = arith.constant 256 : index
    %27 = vector.load %arg3[%c0_9, %c256] : memref<128x384xf32, #tpu.memory_space<vmem>>, vector<128x128xf32>
    %c0_10 = arith.constant 0 : index
    %c0_11 = arith.constant 0 : index
    %28 = vector.load %arg4[%c0_10, %c0_11] : memref<1x384xf32, #tpu.memory_space<vmem>>, vector<1x128xf32>
    %c0_12 = arith.constant 0 : index
    %c128_13 = arith.constant 128 : index
    %29 = vector.load %arg4[%c0_12, %c128_13] : memref<1x384xf32, #tpu.memory_space<vmem>>, vector<1x128xf32>
    %c0_14 = arith.constant 0 : index
    %c256_15 = arith.constant 256 : index
    %30 = vector.load %arg4[%c0_14, %c256_15] : memref<1x384xf32, #tpu.memory_space<vmem>>, vector<1x128xf32>
    %cst_16 = arith.constant dense<0.000000e+00> : vector<8x128xf32>
    %31 = tpu.matmul %1, %25, %cst_16 {dimension_numbers = #tpu.dot_dimension_numbers<[1], [0], [0], [1], [0, 0, 1, 1], [], []>} : vector<8x6xf32>, vector<6x128xf32>, vector<8x128xf32> -> vector<8x128xf32>
    %32 = vector.broadcast %24 : vector<8x1xf32> to vector<8x128xf32>
    %33 = arith.mulf %32, %31 : vector<8x128xf32>
    %cst_17 = arith.constant dense<0.000000e+00> : vector<8x128xf32>
    %34 = tpu.matmul %21, %33, %cst_17 {dimension_numbers = #tpu.dot_dimension_numbers<[1], [0], [0], [1], [0, 0, 1, 1], [], []>} : vector<8x8xf32>, vector<8x128xf32>, vector<8x128xf32> -> vector<8x128xf32>
    %35 = vector.broadcast %24 : vector<8x1xf32> to vector<8x128xf32>
    %36 = arith.mulf %35, %34 : vector<8x128xf32>
    %37 = vector.broadcast %28 : vector<1x128xf32> to vector<8x128xf32>
    %38 = arith.addf %36, %37 : vector<8x128xf32>
    %cst_18 = arith.constant 0.000000e+00 : f32
    %39 = vector.broadcast %cst_18 : f32 to vector<8x128xf32>
    %40 = arith.maximumf %38, %39 : vector<8x128xf32>
    %cst_19 = arith.constant dense<0.000000e+00> : vector<8x128xf32>
    %41 = tpu.matmul %40, %26, %cst_19 {dimension_numbers = #tpu.dot_dimension_numbers<[1], [0], [0], [1], [0, 0, 1, 1], [], []>} : vector<8x128xf32>, vector<128x128xf32>, vector<8x128xf32> -> vector<8x128xf32>
    %42 = vector.broadcast %24 : vector<8x1xf32> to vector<8x128xf32>
    %43 = arith.mulf %42, %41 : vector<8x128xf32>
    %cst_20 = arith.constant dense<0.000000e+00> : vector<8x128xf32>
    %44 = tpu.matmul %21, %43, %cst_20 {dimension_numbers = #tpu.dot_dimension_numbers<[1], [0], [0], [1], [0, 0, 1, 1], [], []>} : vector<8x8xf32>, vector<8x128xf32>, vector<8x128xf32> -> vector<8x128xf32>
    %45 = vector.broadcast %24 : vector<8x1xf32> to vector<8x128xf32>
    %46 = arith.mulf %45, %44 : vector<8x128xf32>
    %47 = vector.broadcast %29 : vector<1x128xf32> to vector<8x128xf32>
    %48 = arith.addf %46, %47 : vector<8x128xf32>
    %cst_21 = arith.constant 0.000000e+00 : f32
    %49 = vector.broadcast %cst_21 : f32 to vector<8x128xf32>
    %50 = arith.maximumf %48, %49 : vector<8x128xf32>
    %51 = vector.extract_strided_slice %1 {offsets = [0, 1], sizes = [8, 1], strides = [1, 1]} : vector<8x6xf32> to vector<8x1xf32>
    %cst_22 = arith.constant 5.000000e-01 : f32
    %52 = vector.broadcast %cst_22 : f32 to vector<8x1xf32>
    %53 = arith.cmpf ogt, %51, %52 : vector<8x1xf32>
    %54 = arith.extui %53 : vector<8x1xi1> to vector<8x1xi32>
    %55 = arith.sitofp %54 : vector<8x1xi32> to vector<8x1xf32>
    %56 = vector.broadcast %55 : vector<8x1xf32> to vector<8x128xf32>
    %57 = arith.mulf %56, %50 : vector<8x128xf32>
    %cst_23 = arith.constant dense<0.000000e+00> : vector<128xf32>
    %58 = vector.multi_reduction <add>, %57, %cst_23 [0] : vector<8x128xf32> to vector<128xf32>
    %59 = vector.shape_cast %58 : vector<128xf32> to vector<1x128xf32>
    %cst_24 = arith.constant dense<0.000000e+00> : vector<1x128xf32>
    %60 = tpu.matmul %59, %27, %cst_24 {dimension_numbers = #tpu.dot_dimension_numbers<[1], [0], [0], [1], [0, 0, 1, 1], [], []>} : vector<1x128xf32>, vector<128x128xf32>, vector<1x128xf32> -> vector<1x128xf32>
    %61 = arith.addf %60, %30 : vector<1x128xf32>
    %c0_25 = arith.constant 0 : index
    %c0_26 = arith.constant 0 : index
    %c0_27 = arith.constant 0 : index
    %62 = vector.load %arg5[%c0_25, %c0_26, %c0_27] : memref<1x1x128xf32, #tpu.memory_space<vmem>>, vector<1x1x128xf32>
    %63 = vector.shape_cast %62 : vector<1x1x128xf32> to vector<1x128xf32>
    %64 = vector.shape_cast %61 : vector<1x128xf32> to vector<1x1x128xf32>
    tpu.vector_store %arg5[%c0_25, %c0_26, %c0_27], %64 {strides = array<i32>} : memref<1x1x128xf32, #tpu.memory_space<vmem>>, vector<1x1x128xf32>,
    return
  }
  func.func @transform_0(%arg0: i32) -> (i32, i32, i32) {
    %c0_i32 = arith.constant 0 : i32
    %c0_i32_0 = arith.constant 0 : i32
    %c0_i32_1 = arith.constant 0 : i32
    return %arg0, %c0_i32, %c0_i32_0 : i32, i32, i32
  }
  func.func @transform_1(%arg0: i32) -> (i32, i32, i32) {
    %c0_i32 = arith.constant 0 : i32
    %c0_i32_0 = arith.constant 0 : i32
    %c0_i32_1 = arith.constant 0 : i32
    return %arg0, %c0_i32, %c0_i32_0 : i32, i32, i32
  }
  func.func @transform_2(%arg0: i32) -> (i32, i32) {
    %c0_i32 = arith.constant 0 : i32
    %c0_i32_0 = arith.constant 0 : i32
    %c0_i32_1 = arith.constant 0 : i32
    return %c0_i32, %c0_i32_0 : i32, i32
  }
  func.func @transform_3(%arg0: i32) -> (i32, i32) {
    %c0_i32 = arith.constant 0 : i32
    %c0_i32_0 = arith.constant 0 : i32
    %c0_i32_1 = arith.constant 0 : i32
    return %c0_i32, %c0_i32_0 : i32, i32
  }
  func.func @transform_4(%arg0: i32) -> (i32, i32, i32) {
    %c0_i32 = arith.constant 0 : i32
    %c0_i32_0 = arith.constant 0 : i32
    %c0_i32_1 = arith.constant 0 : i32
    return %arg0, %c0_i32, %c0_i32_0 : i32, i32, i32
  }
}

</mosaic_0001>

<llo_original>
// kernel: _policy_call.1
$region0: #{_policy_call.1}
  #allocation0 [shape = 'u32[]', space=smem, size = 0x4, offset = 0x4, fixed_abs, tag = 'smem constant byte address 0x4 - core index']
  #allocation1 [shape = 'u32[144,128]{1,0:T(1,128)}', space=vmem, size = 0x12000, scoped, tag = 'internal scratch']
  %s0 = inlined_call_operand.vmem [shape: f32[1,8,6], index: 0, kind: input, shape index: {}]
  %s1 = inlined_call_operand.vmem [shape: s32[1,2,16], index: 1, kind: input, shape index: {}]
  %s2 = inlined_call_operand.hbm [shape: f32[128,384], index: 2, kind: input, shape index: {}]
  %s3 = inlined_call_operand.vmem [shape: f32[1,384], index: 3, kind: input, shape index: {}]
  %s4 = inlined_call_operand.vmem [shape: f32[1,1,128], index: 4, kind: output, shape index: {}]
  %s5 = sld [smem:[#allocation0]]
  $region30: #{_policy_call.1} parent=0
    _
  %s7 = ssub.s32 1, %s5
  %s8 = scalar_select 0, %s7, %s5
  $region1: #{_policy_call.1} parent=0
    #allocation2 [shape = 'u8[196608]{0}', space=vmem, size = 0x30000, scoped, tag = 'input window, operand 2, single buffered']
    #allocation3 [shape = 's32[1]{0}', space=sflag, size = 0x4, scoped, tag = 'scoped memory for _policy_call.1']
    %9 = vsyncpa [#allocation3], 0
    // Predicated region
    $region2: #{_policy_call.1} parent=1 // pred_check
      _
    $region3: #{_policy_call.1} parent=1 // pred_check_branch
      %11 = sbr.rel (0) target = $region5
    $region4: #{_policy_call.1} parent=1 // pred_region
      _
    $region5: #{_policy_call.1} parent=1 // pred_fallthru
      _
    // Predicated region
    $region6: #{_policy_call.1} parent=1 // pred_check
      _
    $region7: #{_policy_call.1} parent=1 // pred_check_branch
      %13 = sbr.rel (0) target = $region9
    $region8: #{_policy_call.1} parent=1 // pred_region
      _
    $region9: #{_policy_call.1} parent=1 // pred_fallthru
      _
    // Predicated region
    $region10: #{_policy_call.1} parent=1 // pred_check
      _
    $region11: #{_policy_call.1} parent=1 // pred_check_branch
      %15 = sbr.rel (0) target = $region13
    $region12: #{_policy_call.1} parent=1 // pred_region
      %s17 = ssub.s32 6144, 6144
      %18 = vsyncadd [#allocation3], %s17
      %s19 = sshll.u32 [#allocation2], 4
      %s20 = int_to_ptr.vmem [resolvable:$true] %s19
      %25 = dma.hbm_to_vmem [thread:$0]  %s2, 6144, %s20, [#allocation3], 384, 384, 24
    $region13: #{_policy_call.1} parent=1 // pred_fallthru
      _
    // Predicated region
    $region14: #{_policy_call.1} parent=1 // pred_check
      _
    $region15: #{_policy_call.1} parent=1 // pred_check_branch
      %27 = sbr.rel (0) target = $region17
    $region16: #{_policy_call.1} parent=1 // pred_region
      _
    $region17: #{_policy_call.1} parent=1 // pred_fallthru
      _
    // Predicated region
    $region18: #{_policy_call.1} parent=1 // pred_check
      _
    $region19: #{_policy_call.1} parent=1 // pred_check_branch
      %29 = sbr.rel (0) target = $region21
    $region20: #{_policy_call.1} parent=1 // pred_region
      %30 = dma.done [#allocation3], 6144
    $region21: #{_policy_call.1} parent=1 // pred_fallthru
      _
    %v31 = vld [vmem:[%s0] sm:$0xff]
    %v32 = vld [vmem:[%s1] sm:$0x3]
    %v33 = vlaneseq
    %v34 = vshrl.u32 %v33, 7
    %v35 = vlaneseq
    %v36 = vshrl.u32 %v35, 7
    %v37 = vsub.s32 0, %v36
    %v38 = vrot.slane %v32, %v37
    %vm39 = vcmp.eq.s32.totalorder %v34, %v38
    %v40 = vsel %vm39, 1, 0
    %v41 = vcvt.s32.f32 %v40
    %v42 = vlaneseq
    %v43 = vshrl.u32 %v42, 7
    %v44 = vsub.s32 1, %v43
    %v45 = vrot.slane %v32, %v44
    %vm46 = vcmp.eq.s32.totalorder %v34, %v45
    %v47 = vsel %vm46, 1, 0
    %v48 = vcvt.s32.f32 %v47
    %v49 = vlaneseq
    %v50 = vand.u32 %v49, 127
    %vm51 = vcmp.eq.s32.totalorder %v34, %v50
    %v52 = vsel %vm51, 1, 0
    %v53 = vcvt.s32.f32 %v52
    %vm54 = vcmask 130048
    %v56 = vsel %vm54, %v48, 0
    %v59 = vsel %vm54, %v41, 0
    %61 = vmatprep.subr.mxu0 0.0
    %62 = vmatpush1.xpose.msra.mxu0 %v59
    %63 = vmatprep.subr.mxu0 0.0
    %64 = vmatpush1.xpose.msra.mxu0 0.0
    %65 = vmatprep.subr.mxu0 0.0
    %66 = vmatpush1.xpose.msra.mxu0 0.0
    %67 = vmatprep.subr.mxu0 0.0
    %68 = vmatpush1.xpose.msra.mxu0 0.0
    %69 = vmatprep.subr.mxu0 0.0
    %70 = vmatpush1.xpose.msra.mxu0 0.0
    %71 = vmatprep.subr.mxu0 0.0
    %72 = vmatpush1.xpose.msra.mxu0 0.0
    %73 = vmatprep.subr.mxu0 0.0
    %74 = vmatpush1.xpose.msra.mxu0 0.0
    %75 = vmatprep.subr.mxu0 0.0
    %76 = vmatpush1.xpose.msra.mxu0 0.0
    %77 = vmatprep.subr.mxu0 0.0
    %78 = vmatpush1.xpose.msra.mxu0 0.0
    %79 = vmatprep.subr.mxu0 0.0
    %80 = vmatpush1.xpose.msra.mxu0 0.0
    %81 = vmatprep.subr.mxu0 0.0
    %82 = vmatpush1.xpose.msra.mxu0 0.0
    %83 = vmatprep.subr.mxu0 0.0
    %84 = vmatpush1.xpose.msra.mxu0 0.0
    %85 = vmatprep.subr.mxu0 0.0
    %86 = vmatpush1.xpose.msra.mxu0 0.0
    %87 = vmatprep.subr.mxu0 0.0
    %88 = vmatpush1.xpose.msra.mxu0 0.0
    %89 = vmatprep.subr.mxu0 0.0
    %90 = vmatpush1.xpose.msra.mxu0 0.0
    %91 = vmatprep.subr.mxu0 0.0
    %92 = vmatpush1.xpose.msra.mxu0 0.0
    %93 = vmatprep.subr.mxu0 0.0
    %94 = vmatpush1.xpose.msra.mxu0 0.0
    %95 = vmatprep.subr.mxu0 0.0
    %96 = vmatpush1.xpose.msra.mxu0 0.0
    %97 = vmatprep.subr.mxu0 0.0
    %98 = vmatpush1.xpose.msra.mxu0 0.0
    %99 = vmatprep.subr.mxu0 0.0
    %100 = vmatpush1.xpose.msra.mxu0 0.0
    %101 = vmatprep.subr.mxu0 0.0
    %102 = vmatpush1.xpose.msra.mxu0 0.0
    %103 = vmatprep.subr.mxu0 0.0
    %104 = vmatpush1.xpose.msra.mxu0 0.0
    %105 = vmatprep.subr.mxu0 0.0
    %106 = vmatpush1.xpose.msra.mxu0 0.0
    %107 = vmatprep.subr.mxu0 0.0
    %108 = vmatpush1.xpose.msra.mxu0 0.0
    %109 = vmatprep.subr.mxu0 0.0
    %110 = vmatpush1.xpose.msra.mxu0 0.0
    %111 = vmatprep.subr.mxu0 0.0
    %112 = vmatpush1.xpose.msra.mxu0 0.0
    %113 = vmatprep.subr.mxu0 0.0
    %114 = vmatpush1.xpose.msra.mxu0 0.0
    %115 = vmatprep.subr.mxu0 0.0
    %116 = vmatpush1.xpose.msra.mxu0 0.0
    %117 = vmatprep.subr.mxu0 0.0
    %118 = vmatpush1.xpose.msra.mxu0 0.0
    %119 = vmatprep.subr.mxu0 0.0
    %120 = vmatpush1.xpose.msra.mxu0 0.0
    %121 = vmatprep.subr.mxu0 0.0
    %122 = vmatpush1.xpose.msra.mxu0 0.0
    %123 = vmatprep.subr.mxu0 0.0
    %124 = vmatpush1.xpose.msra.mxu0 0.0
    %125 = vmatprep.mubr.f32.mxu0 0.0
    %126 = vmatmul.mubr.f32.gmra.mrb[0].mxu0 %v56
    %v127 = vpop.f32.mrb[0].mxu0
    %v128 = vadd.f32 %v53, %v127
    %v129 = vpop.f32.mrb[0].mxu0
    %130 = vdwg.mxu0
    %vm131 = vcmask 64512
    %v132 = vsel %vm131, %v128, 0.0
    %133 = vadd.xlane.f32.xlu0 %v132
    %v134 = vpop.xlane.xlu0 %133
    %v135 = vrsqrt.pop %v134
    %v136 = vld [vmem:[#allocation2] sm:$0x3f]
    %v137 = vld [vmem:[#allocation2 + $0x8] sm:$0xff]
    %v138 = vld [vmem:[#allocation2 + $0x20] sm:$0xff]
    %v139 = vld [vmem:[#allocation2 + $0x38] sm:$0xff]
    %v140 = vld [vmem:[#allocation2 + $0x50] sm:$0xff]
    %v141 = vld [vmem:[#allocation2 + $0x68] sm:$0xff]
    %v142 = vld [vmem:[#allocation2 + $0x80] sm:$0xff]
    %v143 = vld [vmem:[#allocation2 + $0x98] sm:$0xff]
    %v144 = vld [vmem:[#allocation2 + $0xb0] sm:$0xff]
    %v145 = vld [vmem:[#allocation2 + $0xc8] sm:$0xff]
    %v146 = vld [vmem:[#allocation2 + $0xe0] sm:$0xff]
    %v147 = vld [vmem:[#allocation2 + $0xf8] sm:$0xff]
    %v148 = vld [vmem:[#allocation2 + $0x110] sm:$0xff]
    %v149 = vld [vmem:[#allocation2 + $0x128] sm:$0xff]
    %v150 = vld [vmem:[#allocation2 + $0x140] sm:$0xff]
    %v151 = vld [vmem:[#allocation2 + $0x158] sm:$0xff]
    %v152 = vld [vmem:[#allocation2 + $0x170] sm:$0xff]
    %v153 = vld [vmem:[#allocation2 + $0x10] sm:$0xff]
    %v154 = vld [vmem:[#allocation2 + $0x28] sm:$0xff]
    %v155 = vld [vmem:[#allocation2 + $0x40] sm:$0xff]
    %v156 = vld [vmem:[#allocation2 + $0x58] sm:$0xff]
    %v157 = vld [vmem:[#allocation2 + $0x70] sm:$0xff]
    %v158 = vld [vmem:[#allocation2 + $0x88] sm:$0xff]
    %v159 = vld [vmem:[#allocation2 + $0xa0] sm:$0xff]
    %v160 = vld [vmem:[#allocation2 + $0xb8] sm:$0xff]
    %v161 = vld [vmem:[#allocation2 + $0xd0] sm:$0xff]
    %v162 = vld [vmem:[#allocation2 + $0xe8] sm:$0xff]
    %v163 = vld [vmem:[#allocation2 + $0x100] sm:$0xff]
    %v164 = vld [vmem:[#allocation2 + $0x118] sm:$0xff]
    %v165 = vld [vmem:[#allocation2 + $0x130] sm:$0xff]
    %v166 = vld [vmem:[#allocation2 + $0x148] sm:$0xff]
    %v167 = vld [vmem:[#allocation2 + $0x160] sm:$0xff]
    %v168 = vld [vmem:[#allocation2 + $0x178] sm:$0xff]
    %v169 = vld [vmem:[%s3] sm:$0x1]
    %v170 = vld [vmem:[%s3 + $0x1] sm:$0x1]
    %v171 = vld [vmem:[%s3 + $0x2] sm:$0x1]
    %vm172 = vcmask 48128
    %v174 = vsel %vm172, %v31, 0
    %vm176 = vcmask 1045504
    %v178 = vsel %vm176, %v136, 0
    %180 = vmatprep.subr.mxu0 0.0
    %181 = vmatpush1.msra.mxu0 %v178
    %182 = vmatprep.subr.mxu0 0.0
    %183 = vmatpush1.msra.mxu0 0.0
    %184 = vmatprep.subr.mxu0 0.0
    %185 = vmatpush1.msra.mxu0 0.0
    %186 = vmatprep.subr.mxu0 0.0
    %187 = vmatpush1.msra.mxu0 0.0
    %188 = vmatprep.subr.mxu0 0.0
    %189 = vmatpush1.msra.mxu0 0.0
    %190 = vmatprep.subr.mxu0 0.0
    %191 = vmatpush1.msra.mxu0 0.0
    %192 = vmatprep.subr.mxu0 0.0
    %193 = vmatpush1.msra.mxu0 0.0
    %194 = vmatprep.subr.mxu0 0.0
    %195 = vmatpush1.msra.mxu0 0.0
    %196 = vmatprep.subr.mxu0 0.0
    %197 = vmatpush1.msra.mxu0 0.0
    %198 = vmatprep.subr.mxu0 0.0
    %199 = vmatpush1.msra.mxu0 0.0
    %200 = vmatprep.subr.mxu0 0.0
    %201 = vmatpush1.msra.mxu0 0.0
    %202 = vmatprep.subr.mxu0 0.0
    %203 = vmatpush1.msra.mxu0 0.0
    %204 = vmatprep.subr.mxu0 0.0
    %205 = vmatpush1.msra.mxu0 0.0
    %206 = vmatprep.subr.mxu0 0.0
    %207 = vmatpush1.msra.mxu0 0.0
    %208 = vmatprep.subr.mxu0 0.0
    %209 = vmatpush1.msra.mxu0 0.0
    %210 = vmatprep.subr.mxu0 0.0
    %211 = vmatpush1.msra.mxu0 0.0
    %212 = vmatprep.subr.mxu0 0.0
    %213 = vmatpush1.msra.mxu0 0.0
    %214 = vmatprep.subr.mxu0 0.0
    %215 = vmatpush1.msra.mxu0 0.0
    %216 = vmatprep.subr.mxu0 0.0
    %217 = vmatpush1.msra.mxu0 0.0
    %218 = vmatprep.subr.mxu0 0.0
    %219 = vmatpush1.msra.mxu0 0.0
    %220 = vmatprep.subr.mxu0 0.0
    %221 = vmatpush1.msra.mxu0 0.0
    %222 = vmatprep.subr.mxu0 0.0
    %223 = vmatpush1.msra.mxu0 0.0
    %224 = vmatprep.subr.mxu0 0.0
    %225 = vmatpush1.msra.mxu0 0.0
    %226 = vmatprep.subr.mxu0 0.0
    %227 = vmatpush1.msra.mxu0 0.0
    %228 = vmatprep.subr.mxu0 0.0
    %229 = vmatpush1.msra.mxu0 0.0
    %230 = vmatprep.subr.mxu0 0.0
    %231 = vmatpush1.msra.mxu0 0.0
    %232 = vmatprep.subr.mxu0 0.0
    %233 = vmatpush1.msra.mxu0 0.0
    %234 = vmatprep.subr.mxu0 0.0
    %235 = vmatpush1.msra.mxu0 0.0
    %236 = vmatprep.subr.mxu0 0.0
    %237 = vmatpush1.msra.mxu0 0.0
    %238 = vmatprep.subr.mxu0 0.0
    %239 = vmatpush1.msra.mxu0 0.0
    %240 = vmatprep.subr.mxu0 0.0
    %241 = vmatpush1.msra.mxu0 0.0
    %242 = vmatprep.subr.mxu0 0.0
    %243 = vmatpush1.msra.mxu0 0.0
    %244 = vmatprep.mubr.f32.mxu0 0.0
    %245 = vmatmul.mubr.f32.gmra.mrb[0].mxu0 %v174
    %v246 = vpop.f32.mrb[0].mxu0
    %v247 = vadd.f32 0.0, %v246
    %v248 = vpop.f32.mrb[0].mxu0
    %249 = vdwg.mxu0
    %v250 = vmul.f32 %v135, %v247
    %v252 = vsel %vm131, %v128, 0
    %254 = vmatprep.subr.mxu0 0.0
    %255 = vmatpush1.msra.mxu0 %v250
    %256 = vmatprep.subr.mxu0 0.0
    %257 = vmatpush1.msra.mxu0 0.0
    %258 = vmatprep.subr.mxu0 0.0
    %259 = vmatpush1.msra.mxu0 0.0
    %260 = vmatprep.subr.mxu0 0.0
    %261 = vmatpush1.msra.mxu0 0.0
    %262 = vmatprep.subr.mxu0 0.0
    %263 = vmatpush1.msra.mxu0 0.0
    %264 = vmatprep.subr.mxu0 0.0
    %265 = vmatpush1.msra.mxu0 0.0
    %266 = vmatprep.subr.mxu0 0.0
    %267 = vmatpush1.msra.mxu0 0.0
    %268 = vmatprep.subr.mxu0 0.0
    %269 = vmatpush1.msra.mxu0 0.0
    %270 = vmatprep.subr.mxu0 0.0
    %271 = vmatpush1.msra.mxu0 0.0
    %272 = vmatprep.subr.mxu0 0.0
    %273 = vmatpush1.msra.mxu0 0.0
    %274 = vmatprep.subr.mxu0 0.0
    %275 = vmatpush1.msra.mxu0 0.0
    %276 = vmatprep.subr.mxu0 0.0
    %277 = vmatpush1.msra.mxu0 0.0
    %278 = vmatprep.subr.mxu0 0.0
    %279 = vmatpush1.msra.mxu0 0.0
    %280 = vmatprep.subr.mxu0 0.0
    %281 = vmatpush1.msra.mxu0 0.0
    %282 = vmatprep.subr.mxu0 0.0
    %283 = vmatpush1.msra.mxu0 0.0
    %284 = vmatprep.subr.mxu0 0.0
    %285 = vmatpush1.msra.mxu0 0.0
    %286 = vmatprep.subr.mxu0 0.0
    %287 = vmatpush1.msra.mxu0 0.0
    %288 = vmatprep.subr.mxu0 0.0
    %289 = vmatpush1.msra.mxu0 0.0
    %290 = vmatprep.subr.mxu0 0.0
    %291 = vmatpush1.msra.mxu0 0.0
    %292 = vmatprep.subr.mxu0 0.0
    %293 = vmatpush1.msra.mxu0 0.0
    %294 = vmatprep.subr.mxu0 0.0
    %295 = vmatpush1.msra.mxu0 0.0
    %296 = vmatprep.subr.mxu0 0.0
    %297 = vmatpush1.msra.mxu0 0.0
    %298 = vmatprep.subr.mxu0 0.0
    %299 = vmatpush1.msra.mxu0 0.0
    %300 = vmatprep.subr.mxu0 0.0
    %301 = vmatpush1.msra.mxu0 0.0
    %302 = vmatprep.subr.mxu0 0.0
    %303 = vmatpush1.msra.mxu0 0.0
    %304 = vmatprep.subr.mxu0 0.0
    %305 = vmatpush1.msra.mxu0 0.0
    %306 = vmatprep.subr.mxu0 0.0
    %307 = vmatpush1.msra.mxu0 0.0
    %308 = vmatprep.subr.mxu0 0.0
    %309 = vmatpush1.msra.mxu0 0.0
    %310 = vmatprep.subr.mxu0 0.0
    %311 = vmatpush1.msra.mxu0 0.0
    %312 = vmatprep.subr.mxu0 0.0
    %313 = vmatpush1.msra.mxu0 0.0
    %314 = vmatprep.subr.mxu0 0.0
    %315 = vmatpush1.msra.mxu0 0.0
    %316 = vmatprep.subr.mxu0 0.0
    %317 = vmatpush1.msra.mxu0 0.0
    %318 = vmatprep.mubr.f32.mxu0 0.0
    %319 = vmatmul.mubr.f32.gmra.mrb[0].mxu0 %v252
    %v320 = vpop.f32.mrb[0].mxu0
    %v321 = vadd.f32 0.0, %v320
    %v322 = vpop.f32.mrb[0].mxu0
    %323 = vdwg.mxu0
    %v324 = vmul.f32 %v135, %v321
    %v326 = vlaneseq
    %v327 = vshrl.u32 %v326, 7
    %v328 = vsub.s32 0, %v327
    %v329 = vrot.slane %v169, %v328
    %v331 = vadd.f32 %v324, %v329
    %v332 = vmax.f32 %v331, 0.0
    %333 = vmatprep.subr.mxu0 0.0
    %334 = vmatpush1.msra.mxu0 %v137
    %335 = vmatprep.subr.mxu0 0.0
    %336 = vmatpush1.msra.mxu0 %v138
    %337 = vmatprep.subr.mxu0 0.0
    %338 = vmatpush1.msra.mxu0 %v139
    %339 = vmatprep.subr.mxu0 0.0
    %340 = vmatpush1.msra.mxu0 %v140
    %341 = vmatprep.subr.mxu0 0.0
    %342 = vmatpush1.msra.mxu0 %v141
    %343 = vmatprep.subr.mxu0 0.0
    %344 = vmatpush1.msra.mxu0 %v142
    %345 = vmatprep.subr.mxu0 0.0
    %346 = vmatpush1.msra.mxu0 %v143
    %347 = vmatprep.subr.mxu0 0.0
    %348 = vmatpush1.msra.mxu0 %v144
    %349 = vmatprep.subr.mxu0 0.0
    %350 = vmatpush1.msra.mxu0 %v145
    %351 = vmatprep.subr.mxu0 0.0
    %352 = vmatpush1.msra.mxu0 %v146
    %353 = vmatprep.subr.mxu0 0.0
    %354 = vmatpush1.msra.mxu0 %v147
    %355 = vmatprep.subr.mxu0 0.0
    %356 = vmatpush1.msra.mxu0 %v148
    %357 = vmatprep.subr.mxu0 0.0
    %358 = vmatpush1.msra.mxu0 %v149
    %359 = vmatprep.subr.mxu0 0.0
    %360 = vmatpush1.msra.mxu0 %v150
    %361 = vmatprep.subr.mxu0 0.0
    %362 = vmatpush1.msra.mxu0 %v151
    %363 = vmatprep.subr.mxu0 0.0
    %364 = vmatpush1.msra.mxu0 %v152
    %365 = vmatprep.subr.mxu0 0.0
    %366 = vmatpush1.msra.mxu0 0.0
    %367 = vmatprep.subr.mxu0 0.0
    %368 = vmatpush1.msra.mxu0 0.0
    %369 = vmatprep.subr.mxu0 0.0
    %370 = vmatpush1.msra.mxu0 0.0
    %371 = vmatprep.subr.mxu0 0.0
    %372 = vmatpush1.msra.mxu0 0.0
    %373 = vmatprep.subr.mxu0 0.0
    %374 = vmatpush1.msra.mxu0 0.0
    %375 = vmatprep.subr.mxu0 0.0
    %376 = vmatpush1.msra.mxu0 0.0
    %377 = vmatprep.subr.mxu0 0.0
    %378 = vmatpush1.msra.mxu0 0.0
    %379 = vmatprep.subr.mxu0 0.0
    %380 = vmatpush1.msra.mxu0 0.0
    %381 = vmatprep.subr.mxu0 0.0
    %382 = vmatpush1.msra.mxu0 0.0
    %383 = vmatprep.subr.mxu0 0.0
    %384 = vmatpush1.msra.mxu0 0.0
    %385 = vmatprep.subr.mxu0 0.0
    %386 = vmatpush1.msra.mxu0 0.0
    %387 = vmatprep.subr.mxu0 0.0
    %388 = vmatpush1.msra.mxu0 0.0
    %389 = vmatprep.subr.mxu0 0.0
    %390 = vmatpush1.msra.mxu0 0.0
    %391 = vmatprep.subr.mxu0 0.0
    %392 = vmatpush1.msra.mxu0 0.0
    %393 = vmatprep.subr.mxu0 0.0
    %394 = vmatpush1.msra.mxu0 0.0
    %395 = vmatprep.subr.mxu0 0.0
    %396 = vmatpush1.msra.mxu0 0.0
    %397 = vmatprep.mubr.f32.mxu0 0.0
    %398 = vmatmul.mubr.f32.gmra.mrb[0].mxu0 %v332
    %v399 = vpop.f32.mrb[0].mxu0
    %v400 = vadd.f32 0.0, %v399
    %v401 = vpop.f32.mrb[0].mxu0
    %402 = vdwg.mxu0
    %v403 = vmul.f32 %v135, %v400
    %404 = vmatprep.subr.mxu0 0.0
    %405 = vmatpush1.msra.mxu0 %v403
    %406 = vmatprep.subr.mxu0 0.0
    %407 = vmatpush1.msra.mxu0 0.0
    %408 = vmatprep.subr.mxu0 0.0
    %409 = vmatpush1.msra.mxu0 0.0
    %410 = vmatprep.subr.mxu0 0.0
    %411 = vmatpush1.msra.mxu0 0.0
    %412 = vmatprep.subr.mxu0 0.0
    %413 = vmatpush1.msra.mxu0 0.0
    %414 = vmatprep.subr.mxu0 0.0
    %415 = vmatpush1.msra.mxu0 0.0
    %416 = vmatprep.subr.mxu0 0.0
    %417 = vmatpush1.msra.mxu0 0.0
    %418 = vmatprep.subr.mxu0 0.0
    %419 = vmatpush1.msra.mxu0 0.0
    %420 = vmatprep.subr.mxu0 0.0
    %421 = vmatpush1.msra.mxu0 0.0
    %422 = vmatprep.subr.mxu0 0.0
    %423 = vmatpush1.msra.mxu0 0.0
    %424 = vmatprep.subr.mxu0 0.0
    %425 = vmatpush1.msra.mxu0 0.0
    %426 = vmatprep.subr.mxu0 0.0
    %427 = vmatpush1.msra.mxu0 0.0
    %428 = vmatprep.subr.mxu0 0.0
    %429 = vmatpush1.msra.mxu0 0.0
    %430 = vmatprep.subr.mxu0 0.0
    %431 = vmatpush1.msra.mxu0 0.0
    %432 = vmatprep.subr.mxu0 0.0
    %433 = vmatpush1.msra.mxu0 0.0
    %434 = vmatprep.subr.mxu0 0.0
    %435 = vmatpush1.msra.mxu0 0.0
    %436 = vmatprep.subr.mxu0 0.0
    %437 = vmatpush1.msra.mxu0 0.0
    %438 = vmatprep.subr.mxu0 0.0
    %439 = vmatpush1.msra.mxu0 0.0
    %440 = vmatprep.subr.mxu0 0.0
    %441 = vmatpush1.msra.mxu0 0.0
    %442 = vmatprep.subr.mxu0 0.0
    %443 = vmatpush1.msra.mxu0 0.0
    %444 = vmatprep.subr.mxu0 0.0
    %445 = vmatpush1.msra.mxu0 0.0
    %446 = vmatprep.subr.mxu0 0.0
    %447 = vmatpush1.msra.mxu0 0.0
    %448 = vmatprep.subr.mxu0 0.0
    %449 = vmatpush1.msra.mxu0 0.0
    %450 = vmatprep.subr.mxu0 0.0
    %451 = vmatpush1.msra.mxu0 0.0
    %452 = vmatprep.subr.mxu0 0.0
    %453 = vmatpush1.msra.mxu0 0.0
    %454 = vmatprep.subr.mxu0 0.0
    %455 = vmatpush1.msra.mxu0 0.0
    %456 = vmatprep.subr.mxu0 0.0
    %457 = vmatpush1.msra.mxu0 0.0
    %458 = vmatprep.subr.mxu0 0.0
    %459 = vmatpush1.msra.mxu0 0.0
    %460 = vmatprep.subr.mxu0 0.0
    %461 = vmatpush1.msra.mxu0 0.0
    %462 = vmatprep.subr.mxu0 0.0
    %463 = vmatpush1.msra.mxu0 0.0
    %464 = vmatprep.subr.mxu0 0.0
    %465 = vmatpush1.msra.mxu0 0.0
    %466 = vmatprep.subr.mxu0 0.0
    %467 = vmatpush1.msra.mxu0 0.0
    %468 = vmatprep.mubr.f32.mxu0 0.0
    %469 = vmatmul.mubr.f32.gmra.mrb[0].mxu0 %v252
    %v470 = vpop.f32.mrb[0].mxu0
    %v471 = vadd.f32 0.0, %v470
    %v472 = vpop.f32.mrb[0].mxu0
    %473 = vdwg.mxu0
    %v474 = vmul.f32 %v135, %v471
    %v476 = vlaneseq
    %v477 = vshrl.u32 %v476, 7
    %v478 = vsub.s32 0, %v477
    %v479 = vrot.slane %v170, %v478
    %v481 = vadd.f32 %v474, %v479
    %v482 = vmax.f32 %v481, 0.0
    %vm483 = vcmp.gt.f32.partialorder %v31, 0.5
    %v484 = vsel %vm483, 1, 0
    %v485 = vcvt.s32.f32 %v484
    %487 = vset.pattern.permute.xlu0 1
    %488 = vperm.xlu0 %487, %v485
    %v489 = vpop.permute.xlu0 %488
    %v491 = vmul.f32 %v489, %v482
    %v492 = vrot.slane %v491, 4
    %v493 = vadd.f32 %v491, %v492
    %v494 = vrot.slane %v493, 2
    %v495 = vadd.f32 %v493, %v494
    %v496 = vrot.slane %v495, 1
    %v497 = vadd.f32 %v495, %v496
    %498 = vmatprep.subr.mxu0 0.0
    %499 = vmatpush1.msra.mxu0 %v153
    %500 = vmatprep.subr.mxu0 0.0
    %501 = vmatpush1.msra.mxu0 %v154
    %502 = vmatprep.subr.mxu0 0.0
    %503 = vmatpush1.msra.mxu0 %v155
    %504 = vmatprep.subr.mxu0 0.0
    %505 = vmatpush1.msra.mxu0 %v156
    %506 = vmatprep.subr.mxu0 0.0
    %507 = vmatpush1.msra.mxu0 %v157
    %508 = vmatprep.subr.mxu0 0.0
    %509 = vmatpush1.msra.mxu0 %v158
    %510 = vmatprep.subr.mxu0 0.0
    %511 = vmatpush1.msra.mxu0 %v159
    %512 = vmatprep.subr.mxu0 0.0
    %513 = vmatpush1.msra.mxu0 %v160
    %514 = vmatprep.subr.mxu0 0.0
    %515 = vmatpush1.msra.mxu0 %v161
    %516 = vmatprep.subr.mxu0 0.0
    %517 = vmatpush1.msra.mxu0 %v162
    %518 = vmatprep.subr.mxu0 0.0
    %519 = vmatpush1.msra.mxu0 %v163
    %520 = vmatprep.subr.mxu0 0.0
    %521 = vmatpush1.msra.mxu0 %v164
    %522 = vmatprep.subr.mxu0 0.0
    %523 = vmatpush1.msra.mxu0 %v165
    %524 = vmatprep.subr.mxu0 0.0
    %525 = vmatpush1.msra.mxu0 %v166
    %526 = vmatprep.subr.mxu0 0.0
    %527 = vmatpush1.msra.mxu0 %v167
    %528 = vmatprep.subr.mxu0 0.0
    %529 = vmatpush1.msra.mxu0 %v168
    %530 = vmatprep.subr.mxu0 0.0
    %531 = vmatpush1.msra.mxu0 0.0
    %532 = vmatprep.subr.mxu0 0.0
    %533 = vmatpush1.msra.mxu0 0.0
    %534 = vmatprep.subr.mxu0 0.0
    %535 = vmatpush1.msra.mxu0 0.0
    %536 = vmatprep.subr.mxu0 0.0
    %537 = vmatpush1.msra.mxu0 0.0
    %538 = vmatprep.subr.mxu0 0.0
    %539 = vmatpush1.msra.mxu0 0.0
    %540 = vmatprep.subr.mxu0 0.0
    %541 = vmatpush1.msra.mxu0 0.0
    %542 = vmatprep.subr.mxu0 0.0
    %543 = vmatpush1.msra.mxu0 0.0
    %544 = vmatprep.subr.mxu0 0.0
    %545 = vmatpush1.msra.mxu0 0.0
    %546 = vmatprep.subr.mxu0 0.0
    %547 = vmatpush1.msra.mxu0 0.0
    %548 = vmatprep.subr.mxu0 0.0
    %549 = vmatpush1.msra.mxu0 0.0
    %550 = vmatprep.subr.mxu0 0.0
    %551 = vmatpush1.msra.mxu0 0.0
    %552 = vmatprep.subr.mxu0 0.0
    %553 = vmatpush1.msra.mxu0 0.0
    %554 = vmatprep.subr.mxu0 0.0
    %555 = vmatpush1.msra.mxu0 0.0
    %556 = vmatprep.subr.mxu0 0.0
    %557 = vmatpush1.msra.mxu0 0.0
    %558 = vmatprep.subr.mxu0 0.0
    %559 = vmatpush1.msra.mxu0 0.0
    %560 = vmatprep.subr.mxu0 0.0
    %561 = vmatpush1.msra.mxu0 0.0
    %562 = vmatprep.mubr.f32.mxu0 0.0
    %563 = vmatmul.mubr.f32.gmra.mrb[0].mxu0 %v497
    %v564 = vpop.f32.mrb[0].mxu0
    %v565 = vadd.f32 %v171, %v564
    %v566 = vpop.f32.mrb[0].mxu0
    %567 = vdwg.mxu0
    %568 = vst [vmem:[%s4] sm:$0x1] %v565
    // Predicated region
    $region22: #{_policy_call.1} parent=1 // pred_check
      _
    $region23: #{_policy_call.1} parent=1 // pred_check_branch
      %570 = sbr.rel (0) target = $region25
    $region24: #{_policy_call.1} parent=1 // pred_region
      _
    $region25: #{_policy_call.1} parent=1 // pred_fallthru
      _
    // Predicated region
    $region26: #{_policy_call.1} parent=1 // pred_check
      _
    $region27: #{_policy_call.1} parent=1 // pred_check_branch
      %572 = sbr.rel (0) target = $region29
    $region28: #{_policy_call.1} parent=1 // pred_region
      _
    $region29: #{_policy_call.1} parent=1 // pred_fallthru
      _
    %573 = vsyncpa [#allocation3], 1

</llo_original>
